<compile_context>
chip_gen: v7x
topology: tpu7x:2x2x1
jax: 0.10.0
libtpu: 0.0.40
codegen_flags: <defaults>
</compile_context>

<pallas_src>
import jax
import jax.numpy as jnp
from jax.experimental import pallas as pl
from jax.experimental.pallas import tpu as pltpu


def _film_kernel(gamma_ref, beta_ref, x_ref, o_ref):
    # gamma_ref/beta_ref: (c_tile, 1); x_ref/o_ref: (c_tile, t_tile).
    # Implicit broadcasting keeps gamma/beta in a replicated-lane layout and
    # the hot path is one vmul + vadd per vreg of x.
    x = x_ref[...]
    o_ref[...] = (gamma_ref[...] * x + beta_ref[...]).astype(o_ref.dtype)


def _on_v5() -> bool:
    try:
        return "v5" in jax.devices()[0].device_kind.lower()
    except Exception:
        return False


def film_layer(x, conditioning, weight, bias, *,
               c_tile_target=256, t_tile_target=4096):
    """FiLM forward.

    x:            [B, C, T]
    conditioning: [B, F_in]
    weight:       [2C, F_in]   (PyTorch nn.Linear layout; beta rows first)
    bias:         [2C]
    """
    B, C, T = x.shape
    F_in = conditioning.shape[-1]
    assert weight.shape == (2 * C, F_in) and bias.shape == (2 * C,)

    # --- Tiny Linear hoisted out of the kernel (one small XLA matmul) -------
    film = (
        jnp.dot(conditioning.astype(jnp.float32),
                weight.astype(jnp.float32).T,
                preferred_element_type=jnp.float32)
        + bias.astype(jnp.float32)
    )                                                   # [B, 2C], f32 accum
    beta_f32, gamma_f32 = film[:, :C], film[:, C:]      # beta rows first

    # bf16 compute on v6e/v7x (native bf16 VPU); f32 compute on v5e or when x
    # is already f32.  Cast gamma/beta once here, not per tile in the kernel.
    if x.dtype == jnp.bfloat16 and not _on_v5():
        compute_dtype = jnp.bfloat16
    else:
        compute_dtype = jnp.float32
    gamma_col = gamma_f32.astype(compute_dtype)[:, :, None]   # [B, C, 1]
    beta_col = beta_f32.astype(compute_dtype)[:, :, None]     # [B, C, 1]

    # --- Tiling: full extent when small, else aligned to (8, 128) -----------
    c_tile = C if C <= c_tile_target else (c_tile_target // 8) * 8
    t_tile = T if T <= t_tile_target else (t_tile_target // 128) * 128

    grid = (B, pl.cdiv(C, c_tile), pl.cdiv(T, t_tile))

    x_spec = pl.BlockSpec((None, c_tile, t_tile), lambda b, ci, ti: (b, ci, ti))
    gb_spec = pl.BlockSpec((None, c_tile, 1), lambda b, ci, ti: (b, ci, 0))

    return pl.pallas_call(
        _film_kernel,
        out_shape=jax.ShapeDtypeStruct((B, C, T), x.dtype),
        grid_spec=pltpu.PrefetchScalarGridSpec(
            num_scalar_prefetch=0,
            grid=grid,
            in_specs=[gb_spec, gb_spec, x_spec],
            out_specs=x_spec,
        ),
        compiler_params=pltpu.CompilerParams(
            # No scratch carry -> every axis is independent and parallel.
            dimension_semantics=("parallel", "parallel", "parallel"),
            vmem_limit_bytes=48 * 1024 * 1024,
        ),
    )(gamma_col, beta_col, x)


def _reference(x, conditioning, weight, bias):
    # Pure-JAX mirror of the PyTorch forward.
    C = x.shape[1]
    film = conditioning @ weight.T + bias
    beta, gamma = film[:, :C], film[:, C:]
    return gamma[:, :, None] * x + beta[:, :, None]


if __name__ == "__main__":
    key = jax.random.PRNGKey(0)

    # Case 1: toy shape from the module spec (single block, full-extent tiles).
    B, C, T, F_IN = 2, 4, 16, 32
    kx, kc, kw, kb, key = jax.random.split(key, 5)
    x = jax.random.normal(kx, (B, C, T), dtype=jnp.float32)
    cond = jax.random.normal(kc, (B, F_IN), dtype=jnp.float32)
    weight = jax.random.normal(kw, (2 * C, F_IN), dtype=jnp.float32) * 0.1
    bias = jax.random.normal(kb, (2 * C,), dtype=jnp.float32) * 0.1

    out = jax.block_until_ready(film_layer(x, cond, weight, bias))
    ref = _reference(x, cond, weight, bias)
    assert out.shape == x.shape and out.dtype == x.dtype
    assert jnp.allclose(out, ref, atol=1e-5, rtol=1e-5)

    # Case 2: small shape exercising the full 3-D grid (grid = (2, 2, 3)) and
    # the (c_tile, 1) gamma/beta block reuse across T tiles.
    B2, C2, T2, F2 = 2, 16, 384, 32
    kx, kc, kw, kb, key = jax.random.split(key, 5)
    x2 = jax.random.normal(kx, (B2, C2, T2), dtype=jnp.float32)
    cond2 = jax.random.normal(kc, (B2, F2), dtype=jnp.float32)
    weight2 = jax.random.normal(kw, (2 * C2, F2), dtype=jnp.float32) * 0.1
    bias2 = jax.random.normal(kb, (2 * C2,), dtype=jnp.float32) * 0.1

    out2 = jax.block_until_ready(
        film_layer(x2, cond2, weight2, bias2,
                   c_tile_target=8, t_tile_target=128))
    ref2 = _reference(x2, cond2, weight2, bias2)
    assert jnp.allclose(out2, ref2, atol=1e-4, rtol=1e-4)

    # Case 3: bf16 inputs (bf16 compute on v6e/v7x, f32 compute on v5e).
    x3 = x2.astype(jnp.bfloat16)
    out3 = jax.block_until_ready(
        film_layer(x3, cond2, weight2, bias2,
                   c_tile_target=8, t_tile_target=128))
    ref3 = _reference(x3.astype(jnp.float32), cond2, weight2, bias2)
    assert out3.dtype == jnp.bfloat16
    assert jnp.allclose(out3.astype(jnp.float32), ref3, atol=3e-2, rtol=3e-2)

    print("KERNEL_OK")
</pallas_src>

<mosaic_0001>
module attributes {stable_mosaic.version = 11 : i64} {
  func.func @_film_kernel(%arg0: i32, %arg1: i32, %arg2: i32, %arg3: memref<1x4x1xf32, #tpu.memory_space<vmem>>, %arg4: memref<1x4x1xf32, #tpu.memory_space<vmem>>, %arg5: memref<1x4x16xf32, #tpu.memory_space<vmem>>, %arg6: memref<1x4x16xf32, #tpu.memory_space<vmem>>) attributes {dimension_semantics = [#tpu.dimension_semantics<parallel>, #tpu.dimension_semantics<parallel>, #tpu.dimension_semantics<parallel>], iteration_bounds = array<i64: 2, 1, 1>, scalar_prefetch = 0 : i64, scratch_operands = 0 : i64, tpu.core_type = #tpu.core_type<tc>, window_params = [{transform_indices = @transform_0, window_bounds = array<i64: 1, 4, 1>}, {transform_indices = @transform_1, window_bounds = array<i64: 1, 4, 1>}, {transform_indices = @transform_2, window_bounds = array<i64: 1, 4, 16>}, {transform_indices = @transform_3, window_bounds = array<i64: 1, 4, 16>}]} {
    %c0 = arith.constant 0 : index
    %c0_0 = arith.constant 0 : index
    %c0_1 = arith.constant 0 : index
    %0 = vector.load %arg5[%c0, %c0_0, %c0_1] : memref<1x4x16xf32, #tpu.memory_space<vmem>>, vector<1x4x16xf32>
    %1 = vector.shape_cast %0 : vector<1x4x16xf32> to vector<4x16xf32>
    %c0_2 = arith.constant 0 : index
    %c0_3 = arith.constant 0 : index
    %c0_4 = arith.constant 0 : index
    %2 = vector.load %arg3[%c0_2, %c0_3, %c0_4] : memref<1x4x1xf32, #tpu.memory_space<vmem>>, vector<1x4x1xf32>
    %3 = vector.shape_cast %2 : vector<1x4x1xf32> to vector<4x1xf32>
    %4 = vector.broadcast %3 : vector<4x1xf32> to vector<4x16xf32>
    %5 = arith.mulf %4, %1 : vector<4x16xf32>
    %c0_5 = arith.constant 0 : index
    %c0_6 = arith.constant 0 : index
    %c0_7 = arith.constant 0 : index
    %6 = vector.load %arg4[%c0_5, %c0_6, %c0_7] : memref<1x4x1xf32, #tpu.memory_space<vmem>>, vector<1x4x1xf32>
    %7 = vector.shape_cast %6 : vector<1x4x1xf32> to vector<4x1xf32>
    %8 = vector.broadcast %7 : vector<4x1xf32> to vector<4x16xf32>
    %9 = arith.addf %5, %8 : vector<4x16xf32>
    %c0_8 = arith.constant 0 : index
    %c0_9 = arith.constant 0 : index
    %c0_10 = arith.constant 0 : index
    %10 = vector.load %arg6[%c0_8, %c0_9, %c0_10] : memref<1x4x16xf32, #tpu.memory_space<vmem>>, vector<1x4x16xf32>
    %11 = vector.shape_cast %10 : vector<1x4x16xf32> to vector<4x16xf32>
    %12 = vector.shape_cast %9 : vector<4x16xf32> to vector<1x4x16xf32>
    tpu.vector_store %arg6[%c0_8, %c0_9, %c0_10], %12 {strides = array<i32>} : memref<1x4x16xf32, #tpu.memory_space<vmem>>, vector<1x4x16xf32>,
    return
  }
  func.func @transform_0(%arg0: i32, %arg1: i32, %arg2: i32) -> (i32, i32, i32) {
    %c0_i32 = arith.constant 0 : i32
    %c0_i32_0 = arith.constant 0 : i32
    return %arg0, %arg1, %c0_i32 : i32, i32, i32
  }
  func.func @transform_1(%arg0: i32, %arg1: i32, %arg2: i32) -> (i32, i32, i32) {
    %c0_i32 = arith.constant 0 : i32
    %c0_i32_0 = arith.constant 0 : i32
    return %arg0, %arg1, %c0_i32 : i32, i32, i32
  }
  func.func @transform_2(%arg0: i32, %arg1: i32, %arg2: i32) -> (i32, i32, i32) {
    %c0_i32 = arith.constant 0 : i32
    return %arg0, %arg1, %arg2 : i32, i32, i32
  }
  func.func @transform_3(%arg0: i32, %arg1: i32, %arg2: i32) -> (i32, i32, i32) {
    %c0_i32 = arith.constant 0 : i32
    return %arg0, %arg1, %arg2 : i32, i32, i32
  }
}

</mosaic_0001>

<llo_original>
// kernel: tpu_custom_call.1
$region0: #{tpu_custom_call.1}
  #allocation0 [shape = 'u32[]', space=smem, size = 0x4, offset = 0x4, fixed_abs, tag = 'smem constant byte address 0x4 - core index']
  #allocation1 [shape = 'u32[144,128]{1,0:T(1,128)}', space=vmem, size = 0x12000, scoped, tag = 'internal scratch']
  %s0 = inlined_call_operand.vmem [shape: f32[2,4,1], index: 0, kind: input, shape index: {}]
  %s1 = inlined_call_operand.vmem [shape: f32[2,4,1], index: 1, kind: input, shape index: {}]
  %s2 = inlined_call_operand.vmem [shape: f32[2,4,16], index: 2, kind: input, shape index: {}]
  %s3 = inlined_call_operand.hbm [shape: f32[2,4,16], index: 3, kind: output, shape index: {}]
  %s4 = sld [smem:[#allocation0]]
  $region45: #{tpu_custom_call.1} parent=0
    _
  %s6 = ssub.s32 1, %s4
  %s7 = scalar_select 0, %s6, %s4
  $region1: #{tpu_custom_call.1} parent=0
    #allocation2 [shape = 'u8[4096]{0}', space=vmem, size = 0x1000, scoped, tag = 'output window, operand 0']
    #allocation3 [shape = 's32[2]{0}', space=sflag, size = 0x8, scoped, tag = 'scoped memory for tpu_custom_call.1']
    %8 = vsyncpa [#allocation3], 0
    %s9 = scalar_lea.sflag [#allocation3], 1
    %10 = vsyncpa %s9, 0
    loop: start=0, step=1, limit=4
    $region2: #{tpu_custom_call.1} parent=1 // loop_pre_header
      _
    $region3: #{tpu_custom_call.1} parent=1 // loop_header
      %s12 = sphi 0, %s16
      %p13 = scmp.ge.s32.totalorder %s12, 4
      %s19 = sphi 0, %s38
      %s20 = sphi 0, %s34
      %s21 = sphi 0, %s30
      %s22 = sphi 0, %s19
      %s23 = sphi 0, %s20
      %s24 = sphi 0, %s21
      %s25 = sphi 0, %s22
      %s26 = sphi 0, %s23
      %s27 = sphi 0, %s24
      %s43 = sphi 0, %s45
      %s46 = sphi 0, %s43
      %s47 = sphi 0, %s46
      %s63 = sphi 0, %s47
      %s71 = sphi 0, %s73
      %s74 = sphi 0, %s71
      %s75 = sphi 0, %s74
      %s91 = sphi 0, %s75
      %s101 = sphi 0, %s103
      %s104 = sphi 0, %s101
      %s105 = sphi 0, %s104
      %s121 = sphi 0, %s105
      %s131 = sphi 0, %s133
      %s134 = sphi 0, %s131
      %s135 = sphi 0, %s134
      %s151 = sphi 0, %s135
    $region4: #{tpu_custom_call.1} parent=1 // loop_header_branch
      %15 = sbr.rel (%p13) target = $region8
    $region5: #{tpu_custom_call.1} parent=1 // loop_body
      %s17 = ssub.s32 %s12, 1
      %s18 = ssub.s32 %s12, 2
      %s28 = sadd.s32 1, %s21
      %p29 = scmp.ge.s32.totalorder %s28, 1
      %s30 = scalar_select %p29, 0, %s28
      %s31 = sadd.s32 1, %s20
      %s32 = scalar_select %p29, %s31, %s20
      %p33 = scmp.ge.s32.totalorder %s32, 1
      %s34 = scalar_select %p33, 0, %s32
      %s35 = sadd.s32 1, %s19
      %s36 = scalar_select %p33, %s35, %s19
      %p37 = scmp.ge.s32.totalorder %s36, 2
      %s38 = scalar_select %p37, 0, %s36
      %s39 = ssub.s32 %s19, %s38
      %s40 = ssub.s32 %s20, %s34
      %s41 = sor.u32 %s39, %s40
      %p42 = scmp.eq.s32.totalorder %s41, 0
      %s44 = sadd.s32 %s43, 1
      %s45 = scalar_select %p42, %s43, %s44
      %p48 = pneg %p42
      %p49 = scmp.eq.s32.totalorder %s12, 1
      %p50 = por %p48, %p49
      %p51 = scmp.ne.s32.totalorder %s43, %s46
      %p52 = scmp.eq.s32.totalorder %s12, 0
      %p53 = por %p51, %p52
      %p54 = scmp.ne.s32.totalorder %s43, %s46
      %p55 = scmp.eq.s32.totalorder %s17, 1
      %p56 = por %p54, %p55
      %p57 = scmp.ne.s32.totalorder %s46, %s47
      %p58 = scmp.eq.s32.totalorder %s17, 0
      %p59 = por %p57, %p58
      %p60 = scmp.ne.s32.totalorder %s46, %s47
      %p61 = scmp.eq.s32.totalorder %s18, 1
      %p62 = por %p60, %p61
      %p64 = scmp.ne.s32.totalorder %s47, %s63
      %p65 = scmp.eq.s32.totalorder %s18, 0
      %p66 = por %p64, %p65
      %s67 = ssub.s32 %s19, %s38
      %s68 = ssub.s32 %s20, %s34
      %s69 = sor.u32 %s67, %s68
      %p70 = scmp.eq.s32.totalorder %s69, 0
      %s72 = sadd.s32 %s71, 1
      %s73 = scalar_select %p70, %s71, %s72
      %p76 = pneg %p70
      %p77 = scmp.eq.s32.totalorder %s12, 1
      %p78 = por %p76, %p77
      %p79 = scmp.ne.s32.totalorder %s71, %s74
      %p80 = scmp.eq.s32.totalorder %s12, 0
      %p81 = por %p79, %p80
      %p82 = scmp.ne.s32.totalorder %s71, %s74
      %p83 = scmp.eq.s32.totalorder %s17, 1
      %p84 = por %p82, %p83
      %p85 = scmp.ne.s32.totalorder %s74, %s75
      %p86 = scmp.eq.s32.totalorder %s17, 0
      %p87 = por %p85, %p86
      %p88 = scmp.ne.s32.totalorder %s74, %s75
      %p89 = scmp.eq.s32.totalorder %s18, 1
      %p90 = por %p88, %p89
      %p92 = scmp.ne.s32.totalorder %s75, %s91
      %p93 = scmp.eq.s32.totalorder %s18, 0
      %p94 = por %p92, %p93
      %s95 = ssub.s32 %s19, %s38
      %s96 = ssub.s32 %s20, %s34
      %s97 = sor.u32 %s95, %s96
      %s98 = ssub.s32 %s21, %s30
      %s99 = sor.u32 %s97, %s98
      %p100 = scmp.eq.s32.totalorder %s99, 0
      %s102 = sadd.s32 %s101, 1
      %s103 = scalar_select %p100, %s101, %s102
      %p106 = pneg %p100
      %p107 = scmp.eq.s32.totalorder %s12, 1
      %p108 = por %p106, %p107
      %p109 = scmp.ne.s32.totalorder %s101, %s104
      %p110 = scmp.eq.s32.totalorder %s12, 0
      %p111 = por %p109, %p110
      %p112 = scmp.ne.s32.totalorder %s101, %s104
      %p113 = scmp.eq.s32.totalorder %s17, 1
      %p114 = por %p112, %p113
      %p115 = scmp.ne.s32.totalorder %s104, %s105
      %p116 = scmp.eq.s32.totalorder %s17, 0
      %p117 = por %p115, %p116
      %p118 = scmp.ne.s32.totalorder %s104, %s105
      %p119 = scmp.eq.s32.totalorder %s18, 1
      %p120 = por %p118, %p119
      %p122 = scmp.ne.s32.totalorder %s105, %s121
      %p123 = scmp.eq.s32.totalorder %s18, 0
      %p124 = por %p122, %p123
      %s125 = ssub.s32 %s19, %s38
      %s126 = ssub.s32 %s20, %s34
      %s127 = sor.u32 %s125, %s126
      %s128 = ssub.s32 %s21, %s30
      %s129 = sor.u32 %s127, %s128
      %p130 = scmp.eq.s32.totalorder %s129, 0
      %s132 = sadd.s32 %s131, 1
      %s133 = scalar_select %p130, %s131, %s132
      %p136 = pneg %p130
      %p137 = scmp.eq.s32.totalorder %s12, 1
      %p138 = por %p136, %p137
      %p139 = scmp.ne.s32.totalorder %s131, %s134
      %p140 = scmp.eq.s32.totalorder %s12, 0
      %p141 = por %p139, %p140
      %p142 = scmp.ne.s32.totalorder %s131, %s134
      %p143 = scmp.eq.s32.totalorder %s17, 1
      %p144 = por %p142, %p143
      %p145 = scmp.ne.s32.totalorder %s134, %s135
      %p146 = scmp.eq.s32.totalorder %s17, 0
      %p147 = por %p145, %p146
      %p148 = scmp.ne.s32.totalorder %s134, %s135
      %p149 = scmp.eq.s32.totalorder %s18, 1
      %p150 = por %p148, %p149
      %p152 = scmp.ne.s32.totalorder %s135, %s151
      %p153 = scmp.eq.s32.totalorder %s18, 0
      %p154 = por %p152, %p153
      %p155 = scmp.le.s32.totalorder 1, %s12
      %p156 = scmp.lt.s32.totalorder %s12, 3
      %p157 = pnand %p155, %p156
      %p158 = pneg %p157
      // Predicated region
      $region9: #{tpu_custom_call.1} parent=5 // pred_check
        _
      $region10: #{tpu_custom_call.1} parent=5 // pred_check_branch
        %160 = sbr.rel (%p157) target = $region12
      $region11: #{tpu_custom_call.1} parent=5 // pred_region
        %s161 = ssub.s32 %s12, 1
      $region12: #{tpu_custom_call.1} parent=5 // pred_fallthru
        _
      %p162 = scmp.lt.s32.totalorder %s12, 2
      // Predicated region
      $region13: #{tpu_custom_call.1} parent=5 // pred_check
        %p163 = pneg %p162
      $region14: #{tpu_custom_call.1} parent=5 // pred_check_branch
        %165 = sbr.rel (%p163) target = $region16
      $region15: #{tpu_custom_call.1} parent=5 // pred_region
        // Predicated region
        $region17: #{tpu_custom_call.1} parent=15 // pred_check
          %p166 = pneg %p53
        $region18: #{tpu_custom_call.1} parent=15 // pred_check_branch
          %168 = sbr.rel (%p166) target = $region20
        $region19: #{tpu_custom_call.1} parent=15 // pred_region
          %p169 = scmp.lt.s32.totalorder %s19, 1
          %s170 = scalar_select %p169, %s19, 1
          %p171 = scmp.lt.s32.totalorder %s20, 0
          %s172 = scalar_select %p171, %s20, 0
          %s173 = sadd.s32 %s172, %s170
          %s174 = smul.addr %s173, 4
          %s175 = scalar_lea.vmem %s0, %s174
        $region20: #{tpu_custom_call.1} parent=15 // pred_fallthru
          _
        // Predicated region
        $region21: #{tpu_custom_call.1} parent=15 // pred_check
          %p176 = pneg %p81
        $region22: #{tpu_custom_call.1} parent=15 // pred_check_branch
          %178 = sbr.rel (%p176) target = $region24
        $region23: #{tpu_custom_call.1} parent=15 // pred_region
          %p179 = scmp.lt.s32.totalorder %s19, 1
          %s180 = scalar_select %p179, %s19, 1
          %p181 = scmp.lt.s32.totalorder %s20, 0
          %s182 = scalar_select %p181, %s20, 0
          %s183 = sadd.s32 %s182, %s180
          %s184 = smul.addr %s183, 4
          %s185 = scalar_lea.vmem %s1, %s184
        $region24: #{tpu_custom_call.1} parent=15 // pred_fallthru
          _
        // Predicated region
        $region25: #{tpu_custom_call.1} parent=15 // pred_check
          %p186 = pneg %p111
        $region26: #{tpu_custom_call.1} parent=15 // pred_check_branch
          %188 = sbr.rel (%p186) target = $region28
        $region27: #{tpu_custom_call.1} parent=15 // pred_region
          %p189 = scmp.lt.s32.totalorder %s19, 1
          %s190 = scalar_select %p189, %s19, 1
          %p191 = scmp.lt.s32.totalorder %s20, 0
          %s192 = scalar_select %p191, %s20, 0
          %p193 = scmp.lt.s32.totalorder %s21, 0
          %s194 = scalar_select %p193, %s21, 0
          %s195 = sadd.s32 %s194, %s192
          %s196 = sadd.s32 %s195, %s190
          %s197 = smul.addr %s196, 4
          %s198 = scalar_lea.vmem %s2, %s197
        $region28: #{tpu_custom_call.1} parent=15 // pred_fallthru
          _
      $region16: #{tpu_custom_call.1} parent=5 // pred_fallthru
        _
      %p199 = scmp.le.s32.totalorder 1, %s12
      %p200 = scmp.lt.s32.totalorder %s12, 3
      %p201 = pnand %p199, %p200
      %p202 = pneg %p201
      // Predicated region
      $region29: #{tpu_custom_call.1} parent=5 // pred_check
        _
      $region30: #{tpu_custom_call.1} parent=5 // pred_check_branch
        %204 = sbr.rel (%p201) target = $region32
      $region31: #{tpu_custom_call.1} parent=5 // pred_region
        %s205 = ssub.s32 %s12, 1
        %p206 = scmp.lt.s32.totalorder %s22, 1
        %s207 = scalar_select %p206, %s22, 1
        %p208 = scmp.lt.s32.totalorder %s23, 0
        %s209 = scalar_select %p208, %s23, 0
        %s210 = sadd.s32 %s209, %s207
        %s211 = smul.addr %s210, 4
        %s212 = scalar_lea.vmem %s0, %s211
        %p213 = pneg %p59
        %p214 = pneg %p56
        %p215 = scmp.lt.s32.totalorder %s22, 1
        %s216 = scalar_select %p215, %s22, 1
        %p217 = scmp.lt.s32.totalorder %s23, 0
        %s218 = scalar_select %p217, %s23, 0
        %s219 = sadd.s32 %s218, %s216
        %s220 = smul.addr %s219, 4
        %s221 = scalar_lea.vmem %s1, %s220
        %p222 = pneg %p87
        %p223 = pneg %p84
        %p224 = scmp.lt.s32.totalorder %s22, 1
        %s225 = scalar_select %p224, %s22, 1
        %p226 = scmp.lt.s32.totalorder %s23, 0
        %s227 = scalar_select %p226, %s23, 0
        %p228 = scmp.lt.s32.totalorder %s24, 0
        %s229 = scalar_select %p228, %s24, 0
        %s230 = sadd.s32 %s229, %s227
        %s231 = sadd.s32 %s230, %s225
        %s232 = smul.addr %s231, 4
        %s233 = scalar_lea.vmem %s2, %s232
        %p234 = pneg %p117
        %p235 = pneg %p114
        %p236 = pneg %p147
        %p237 = pneg %p144
        %s238 = sand.u32 %s134, 1
        %s239 = scalar_lea.sflag [#allocation3], %s238
        %s240 = sand.u32 %s134, 1
        %s241 = smul.addr %s240, 4
        %s242 = scalar_lea.vmem [#allocation2], %s241
        %p243 = scmp.lt.s32.totalorder %s22, 1
        %s244 = scalar_select %p243, %s22, 1
        %p245 = scmp.lt.s32.totalorder %s23, 0
        %s246 = scalar_select %p245, %s23, 0
        %s247 = sadd.s32 %s246, %s244
        %s248 = smul.addr %s247, 4
        %s249 = scalar_lea.vmem %s0, %s248
        %p250 = scmp.lt.s32.totalorder %s22, 1
        %s251 = scalar_select %p250, %s22, 1
        %p252 = scmp.lt.s32.totalorder %s23, 0
        %s253 = scalar_select %p252, %s23, 0
        %s254 = sadd.s32 %s253, %s251
        %s255 = smul.addr %s254, 4
        %s256 = scalar_lea.vmem %s1, %s255
        %p257 = scmp.lt.s32.totalorder %s22, 1
        %s258 = scalar_select %p257, %s22, 1
        %p259 = scmp.lt.s32.totalorder %s23, 0
        %s260 = scalar_select %p259, %s23, 0
        %p261 = scmp.lt.s32.totalorder %s24, 0
        %s262 = scalar_select %p261, %s24, 0
        %s263 = sadd.s32 %s262, %s260
        %s264 = sadd.s32 %s263, %s258
        %s265 = smul.addr %s264, 4
        %s266 = scalar_lea.vmem %s2, %s265
        %v267 = vld [vmem:[%s266] sm:$0xf]
        %v268 = vld [vmem:[%s249] sm:$0xf]
        %270 = vset.pattern.permute.xlu0 0
        %271 = vperm.xlu0 %270, %v268
        %v272 = vpop.permute.xlu0 %271
        %v274 = vmul.f32 %v272, %v267
        %v275 = vld [vmem:[%s256] sm:$0xf]
        %277 = vset.pattern.permute.xlu0 0
        %278 = vperm.xlu0 %277, %v275
        %v279 = vpop.permute.xlu0 %278
        %v281 = vadd.f32 %v274, %v279
        %vm282 = vcmask 125952
        %283 = vst.msk [vmem:[%s242] sm:$0xf] %vm282, %v281
        %s284 = sand.u32 %s134, 1
        %s285 = scalar_lea.sflag [#allocation3], %s284
        %s286 = sand.u32 %s134, 1
        %s287 = smul.addr %s286, 4
        %s288 = scalar_lea.vmem [#allocation2], %s287
        // Predicated region
        $region33: #{tpu_custom_call.1} parent=31 // pred_check
          %p289 = pneg %p144
        $region34: #{tpu_custom_call.1} parent=31 // pred_check_branch
          %291 = sbr.rel (%p289) target = $region36
        $region35: #{tpu_custom_call.1} parent=31 // pred_region
          %s293 = ssub.s32 64, 64
          %294 = vsyncadd %s285, %s293
          %s295 = sadd.s32 %s24, %s23
          %s296 = sadd.s32 %s295, %s22
          %s297 = smul.addr %s296, 64
          %s298 = scalar_lea.hbm %s3, %s297
          %s300 = sshll.u32 %s288, 4
          %s301 = int_to_ptr.vmem [resolvable:$true] %s300
          %303 = dma.vmem_to_hbm [thread:$0]  %s301, 64, %s298, %s285
        $region36: #{tpu_custom_call.1} parent=31 // pred_fallthru
          _
      $region32: #{tpu_custom_call.1} parent=5 // pred_fallthru
        _
      %p304 = scmp.le.s32.totalorder 2, %s12
      // Predicated region
      $region37: #{tpu_custom_call.1} parent=5 // pred_check
        %p305 = pneg %p304
      $region38: #{tpu_custom_call.1} parent=5 // pred_check_branch
        %307 = sbr.rel (%p305) target = $region40
      $region39: #{tpu_custom_call.1} parent=5 // pred_region
        %s308 = ssub.s32 %s12, 2
        // Predicated region
        $region41: #{tpu_custom_call.1} parent=39 // pred_check
          %p309 = pneg %p150
        $region42: #{tpu_custom_call.1} parent=39 // pred_check_branch
          %311 = sbr.rel (%p309) target = $region44
        $region43: #{tpu_custom_call.1} parent=39 // pred_region
          %s312 = sand.u32 %s135, 1
          %s313 = scalar_lea.sflag [#allocation3], %s312
          %s314 = sand.u32 %s135, 1
          %s315 = smul.addr %s314, 4
          %s316 = scalar_lea.vmem [#allocation2], %s315
          %317 = dma.done %s313, 64
        $region44: #{tpu_custom_call.1} parent=39 // pred_fallthru
          _
      $region40: #{tpu_custom_call.1} parent=5 // pred_fallthru
        _
    $region6: #{tpu_custom_call.1} parent=1 // loop_footer
      %s16 = sadd.s32 1, %s12
    $region7: #{tpu_custom_call.1} parent=1 // loop_footer_branch
      %11 = sbr.rel target = $region3
    $region8: #{tpu_custom_call.1} parent=1 // loop_exit
      _
    %318 = vsyncpa [#allocation3], 1
    %s319 = scalar_lea.sflag [#allocation3], 1
    %320 = vsyncpa %s319, 1

</llo_original>
